<compile_context>
chip_gen: v5e
topology: v5e:2x2
jax: 0.10.0
libtpu: 0.0.40
codegen_flags: <defaults>
</compile_context>

<pallas_src>
import jax
import jax.numpy as jnp
from jax.experimental import pallas as pl
from jax.experimental.pallas import tpu as pltpu

_SUBLANE = 8


def _round_up(n: int, m: int) -> int:
    return ((n + m - 1) // m) * m


def _mlp_kernel(x_ref, w1_ref, b1_ref, w2_ref, b2_ref, o_ref):
    # ---- l1: x @ W1 + b1 (f32 MXU matmul, f32 accumulate) -------------------
    h = jnp.dot(x_ref[...], w1_ref[...], preferred_element_type=jnp.float32)
    h = h + b1_ref[...]                       # broadcasts (1, hidn) over rows
    # ---- dropout(p=0.2) ------------------------------------------------------
    # TODO(synk): nn.Dropout is stochastic only in training mode; inference
    # (model.eval()) semantics are identity, which is what we implement here.
    # Training parity would need pltpu.prng_seed + pltpu.prng_random_bits.
    # ---- ReLU (VPU) ----------------------------------------------------------
    h = jnp.maximum(h, 0.0)
    # ---- l2: h @ W2 + b2 -----------------------------------------------------
    out = jnp.dot(h, w2_ref[...], preferred_element_type=jnp.float32)
    out = out + b2_ref[...]
    # ---- ReLU + store only the real oupt columns (no padded output traffic) --
    o_ref[...] = jnp.maximum(out, 0.0)


def neural_net_forward(x, w1, b1, w2, b2, *, block_b: int = 4096,
                       min_pallas_batch: int = 256, force_pallas: bool = False):
    """Forward pass of NeuralNet.

    x  : [B, inpt]  (any dtype; cast to f32 per x.to(torch.float32))
    w1 : [inpt, hidn]   b1 : [hidn] or [1, hidn]
    w2 : [hidn, oupt]   b2 : [oupt] or [1, oupt]
    returns [B, oupt] float32
    """
    B, inpt = x.shape
    hidn = w1.shape[1]
    oupt = w2.shape[1]

    xf = x.astype(jnp.float32)                       # x.to(torch.float32)
    w1f = w1.astype(jnp.float32)
    w2f = w2.astype(jnp.float32)
    b1f = jnp.reshape(b1, (1, hidn)).astype(jnp.float32)
    b2f = jnp.reshape(b2, (1, oupt)).astype(jnp.float32)

    # Small-batch fallback: pallas_call launch overhead would dominate.
    if B < min_pallas_batch and not force_pallas:
        h = jnp.maximum(
            jnp.dot(xf, w1f, preferred_element_type=jnp.float32) + b1f, 0.0)
        return jnp.maximum(
            jnp.dot(h, w2f, preferred_element_type=jnp.float32) + b2f, 0.0)

    # Batch tile: multiple of the 8-row sublane, at least 2 grid steps whenever
    # B allows (keeps both v7x TensorCores busy via "parallel" semantics).
    tb = min(block_b, max(_SUBLANE, _round_up((B + 1) // 2, _SUBLANE)))
    grid = (pl.cdiv(B, tb),)                 # partial last block is OOB-masked

    # VMEM budget: resident weights/biases + double-buffered x/out tiles +
    # f32 intermediates, with 2x headroom; capped so it also fits v7x (64 MiB).
    weight_bytes = (inpt * hidn + hidn * oupt + hidn + oupt) * 4
    stream_bytes = 2 * tb * (inpt + oupt) * 4        # double-buffered tiles
    interm_bytes = tb * (hidn + oupt) * 4
    vmem_limit = int(min(48 * 1024 * 1024,
                         max(4 * 1024 * 1024,
                             2 * (weight_bytes + stream_bytes + interm_bytes))))

    out = pl.pallas_call(
        _mlp_kernel,
        out_shape=jax.ShapeDtypeStruct((B, oupt), jnp.float32),
        grid=grid,
        in_specs=[
            # streamed activation tile; last dim == full array dim, so legal
            pl.BlockSpec((tb, inpt), lambda i: (i, 0)),
            pl.BlockSpec((inpt, hidn), lambda i: (0, 0)),   # VMEM-resident W1
            pl.BlockSpec((1, hidn), lambda i: (0, 0)),      # VMEM-resident b1
            pl.BlockSpec((hidn, oupt), lambda i: (0, 0)),   # VMEM-resident W2
            pl.BlockSpec((1, oupt), lambda i: (0, 0)),      # VMEM-resident b2
        ],
        out_specs=pl.BlockSpec((tb, oupt), lambda i: (i, 0)),
        compiler_params=pltpu.CompilerParams(
            dimension_semantics=("parallel",),   # megacore sharding on v7x
            vmem_limit_bytes=vmem_limit,
        ),
    )(xf, w1f, b1f, w2f, b2f)
    return out


def init_params(key, inpt, hidn, oupt):
    """nn.Linear-style init (uniform +/- 1/sqrt(fan_in)).
    Weights stored as [in, out] (transpose of PyTorch's [out, in])."""
    k1, k2, k3, k4 = jax.random.split(key, 4)
    lim1 = 1.0 / jnp.sqrt(jnp.float32(inpt))
    lim2 = 1.0 / jnp.sqrt(jnp.float32(hidn))
    w1 = jax.random.uniform(k1, (inpt, hidn), jnp.float32, -lim1, lim1)
    b1 = jax.random.uniform(k2, (1, hidn), jnp.float32, -lim1, lim1)
    w2 = jax.random.uniform(k3, (hidn, oupt), jnp.float32, -lim2, lim2)
    b2 = jax.random.uniform(k4, (1, oupt), jnp.float32, -lim2, lim2)
    return w1, b1, w2, b2


def _reference(x, w1, b1, w2, b2):
    """Plain-JAX f32 reference."""
    xf = x.astype(jnp.float32)
    h = jnp.maximum(
        jnp.dot(xf, w1, preferred_element_type=jnp.float32)
        + jnp.reshape(b1, (1, -1)), 0.0)
    return jnp.maximum(
        jnp.dot(h, w2, preferred_element_type=jnp.float32)
        + jnp.reshape(b2, (1, -1)), 0.0)


if __name__ == "__main__":
    # Small shapes implied by the module: batch=8, inpt=32, hidn=64, oupt=16
    B, inpt, hidn, oupt = 8, 32, 64, 16

    key = jax.random.PRNGKey(0)
    kx, kp, kx2 = jax.random.split(key, 3)
    x = jax.random.normal(kx, (B, inpt), jnp.float32)
    w1, b1, w2, b2 = init_params(kp, inpt, hidn, oupt)

    # Small batch: force the Pallas path so the kernel itself is exercised.
    out = jax.block_until_ready(
        neural_net_forward(x, w1, b1, w2, b2, force_pallas=True))
    ref = _reference(x, w1, b1, w2, b2)
    assert out.shape == (B, oupt)
    assert jnp.allclose(out, ref, atol=2e-3, rtol=2e-3), \
        float(jnp.max(jnp.abs(out - ref)))

    # Larger (non-multiple-of-tile) batch: exercises the 2-step parallel grid
    # and the OOB-masked partial last block.
    B2 = 2048 + 24
    x2 = jax.random.normal(kx2, (B2, inpt), jnp.float32)
    out2 = jax.block_until_ready(
        neural_net_forward(x2, w1, b1, w2, b2, block_b=1024))
    ref2 = _reference(x2, w1, b1, w2, b2)
    assert out2.shape == (B2, oupt)
    assert jnp.allclose(out2, ref2, atol=2e-3, rtol=2e-3), \
        float(jnp.max(jnp.abs(out2 - ref2)))

    print("KERNEL_OK")
</pallas_src>

<mosaic_0001>
module attributes {stable_mosaic.version = 11 : i64} {
  func.func @_mlp_kernel(%arg0: i32, %arg1: memref<8x32xf32, #tpu.memory_space<vmem>>, %arg2: memref<32x64xf32, #tpu.memory_space<vmem>>, %arg3: memref<1x64xf32, #tpu.memory_space<vmem>>, %arg4: memref<64x16xf32, #tpu.memory_space<vmem>>, %arg5: memref<1x16xf32, #tpu.memory_space<vmem>>, %arg6: memref<8x16xf32, #tpu.memory_space<vmem>>) attributes {dimension_semantics = [#tpu.dimension_semantics<parallel>], iteration_bounds = array<i64: 1>, scalar_prefetch = 0 : i64, scratch_operands = 0 : i64, tpu.core_type = #tpu.core_type<tc>, window_params = [{transform_indices = @transform_0, window_bounds = array<i64: 8, 32>}, {pipeline_mode = #tpu.pipeline_mode<synchronous>, transform_indices = @transform_1, window_bounds = array<i64: 32, 64>}, {pipeline_mode = #tpu.pipeline_mode<synchronous>, transform_indices = @transform_2, window_bounds = array<i64: 1, 64>}, {pipeline_mode = #tpu.pipeline_mode<synchronous>, transform_indices = @transform_3, window_bounds = array<i64: 64, 16>}, {pipeline_mode = #tpu.pipeline_mode<synchronous>, transform_indices = @transform_4, window_bounds = array<i64: 1, 16>}, {transform_indices = @transform_5, window_bounds = array<i64: 8, 16>}]} {
    %c0 = arith.constant 0 : index
    %c0_0 = arith.constant 0 : index
    %0 = vector.load %arg1[%c0, %c0_0] : memref<8x32xf32, #tpu.memory_space<vmem>>, vector<8x32xf32>
    %c0_1 = arith.constant 0 : index
    %c0_2 = arith.constant 0 : index
    %1 = vector.load %arg2[%c0_1, %c0_2] : memref<32x64xf32, #tpu.memory_space<vmem>>, vector<32x64xf32>
    %cst = arith.constant dense<0.000000e+00> : vector<8x64xf32>
    %2 = tpu.matmul %0, %1, %cst {dimension_numbers = #tpu.dot_dimension_numbers<[1], [0], [0], [1], [0, 0, 1, 1], [], []>} : vector<8x32xf32>, vector<32x64xf32>, vector<8x64xf32> -> vector<8x64xf32>
    %c0_3 = arith.constant 0 : index
    %c0_4 = arith.constant 0 : index
    %3 = vector.load %arg3[%c0_3, %c0_4] : memref<1x64xf32, #tpu.memory_space<vmem>>, vector<1x64xf32>
    %4 = vector.broadcast %3 : vector<1x64xf32> to vector<8x64xf32>
    %5 = arith.addf %2, %4 : vector<8x64xf32>
    %cst_5 = arith.constant 0.000000e+00 : f32
    %6 = vector.broadcast %cst_5 : f32 to vector<8x64xf32>
    %7 = arith.maximumf %5, %6 : vector<8x64xf32>
    %c0_6 = arith.constant 0 : index
    %c0_7 = arith.constant 0 : index
    %8 = vector.load %arg4[%c0_6, %c0_7] : memref<64x16xf32, #tpu.memory_space<vmem>>, vector<64x16xf32>
    %cst_8 = arith.constant dense<0.000000e+00> : vector<8x16xf32>
    %9 = tpu.matmul %7, %8, %cst_8 {dimension_numbers = #tpu.dot_dimension_numbers<[1], [0], [0], [1], [0, 0, 1, 1], [], []>} : vector<8x64xf32>, vector<64x16xf32>, vector<8x16xf32> -> vector<8x16xf32>
    %c0_9 = arith.constant 0 : index
    %c0_10 = arith.constant 0 : index
    %10 = vector.load %arg5[%c0_9, %c0_10] : memref<1x16xf32, #tpu.memory_space<vmem>>, vector<1x16xf32>
    %11 = vector.broadcast %10 : vector<1x16xf32> to vector<8x16xf32>
    %12 = arith.addf %9, %11 : vector<8x16xf32>
    %cst_11 = arith.constant 0.000000e+00 : f32
    %13 = vector.broadcast %cst_11 : f32 to vector<8x16xf32>
    %14 = arith.maximumf %12, %13 : vector<8x16xf32>
    %c0_12 = arith.constant 0 : index
    %c0_13 = arith.constant 0 : index
    %15 = vector.load %arg6[%c0_12, %c0_13] : memref<8x16xf32, #tpu.memory_space<vmem>>, vector<8x16xf32>
    tpu.vector_store %arg6[%c0_12, %c0_13], %14 {strides = array<i32>} : memref<8x16xf32, #tpu.memory_space<vmem>>, vector<8x16xf32>,
    return
  }
  func.func @transform_0(%arg0: i32) -> (i32, i32) {
    %c0_i32 = arith.constant 0 : i32
    %c0_i32_0 = arith.constant 0 : i32
    return %arg0, %c0_i32 : i32, i32
  }
  func.func @transform_1(%arg0: i32) -> (i32, i32) {
    %c0_i32 = arith.constant 0 : i32
    %c0_i32_0 = arith.constant 0 : i32
    %c0_i32_1 = arith.constant 0 : i32
    return %c0_i32, %c0_i32_0 : i32, i32
  }
  func.func @transform_2(%arg0: i32) -> (i32, i32) {
    %c0_i32 = arith.constant 0 : i32
    %c0_i32_0 = arith.constant 0 : i32
    %c0_i32_1 = arith.constant 0 : i32
    return %c0_i32, %c0_i32_0 : i32, i32
  }
  func.func @transform_3(%arg0: i32) -> (i32, i32) {
    %c0_i32 = arith.constant 0 : i32
    %c0_i32_0 = arith.constant 0 : i32
    %c0_i32_1 = arith.constant 0 : i32
    return %c0_i32, %c0_i32_0 : i32, i32
  }
  func.func @transform_4(%arg0: i32) -> (i32, i32) {
    %c0_i32 = arith.constant 0 : i32
    %c0_i32_0 = arith.constant 0 : i32
    %c0_i32_1 = arith.constant 0 : i32
    return %c0_i32, %c0_i32_0 : i32, i32
  }
  func.func @transform_5(%arg0: i32) -> (i32, i32) {
    %c0_i32 = arith.constant 0 : i32
    %c0_i32_0 = arith.constant 0 : i32
    return %arg0, %c0_i32 : i32, i32
  }
}

</mosaic_0001>

<llo_original>
// kernel: tpu_custom_call.1
$region0: #{tpu_custom_call.1}
  #allocation0 [shape = 'u32[]', space=smem, size = 0x4, offset = 0x4, fixed_abs, tag = 'smem constant byte address 0x4 - core index']
  #allocation1 [shape = 'u32[72,128]{1,0:T(1,128)}', space=vmem, size = 0x9000, scoped, tag = 'internal scratch']
  %s0 = inlined_call_operand.vmem [shape: f32[8,32], index: 0, kind: input, shape index: {}]
  %s1 = inlined_call_operand.vmem [shape: f32[32,64], index: 1, kind: input, shape index: {}]
  %s2 = inlined_call_operand.vmem [shape: f32[1,64], index: 2, kind: input, shape index: {}]
  %s3 = inlined_call_operand.vmem [shape: f32[64,16], index: 3, kind: input, shape index: {}]
  %s4 = inlined_call_operand.vmem [shape: f32[1,16], index: 4, kind: input, shape index: {}]
  %s5 = inlined_call_operand.hbm [shape: f32[8,16], index: 5, kind: output, shape index: {}]
  %s6 = sld [smem:[#allocation0]]
  $region30: #{tpu_custom_call.1} parent=0
    _
  %s8 = ssub.s32 1, %s6
  %s9 = scalar_select 0, %s8, %s6
  $region1: #{tpu_custom_call.1} parent=0
    #allocation2 [shape = 'u8[4096]{0}', space=vmem, size = 0x1000, scoped, tag = 'output window, operand 0, single buffered']
    #allocation3 [shape = 's32[1]{0}', space=sflag, size = 0x4, scoped, tag = 'scoped memory for tpu_custom_call.1']
    %10 = vsyncpa [#allocation3], 0
    // Predicated region
    $region2: #{tpu_custom_call.1} parent=1 // pred_check
      _
    $region3: #{tpu_custom_call.1} parent=1 // pred_check_branch
      %12 = sbr.rel (0) target = $region5
    $region4: #{tpu_custom_call.1} parent=1 // pred_region
      _
    $region5: #{tpu_custom_call.1} parent=1 // pred_fallthru
      _
    // Predicated region
    $region6: #{tpu_custom_call.1} parent=1 // pred_check
      _
    $region7: #{tpu_custom_call.1} parent=1 // pred_check_branch
      %14 = sbr.rel (0) target = $region9
    $region8: #{tpu_custom_call.1} parent=1 // pred_region
      _
    $region9: #{tpu_custom_call.1} parent=1 // pred_fallthru
      _
    // Predicated region
    $region10: #{tpu_custom_call.1} parent=1 // pred_check
      _
    $region11: #{tpu_custom_call.1} parent=1 // pred_check_branch
      %16 = sbr.rel (0) target = $region13
    $region12: #{tpu_custom_call.1} parent=1 // pred_region
      _
    $region13: #{tpu_custom_call.1} parent=1 // pred_fallthru
      _
    // Predicated region
    $region14: #{tpu_custom_call.1} parent=1 // pred_check
      _
    $region15: #{tpu_custom_call.1} parent=1 // pred_check_branch
      %18 = sbr.rel (0) target = $region17
    $region16: #{tpu_custom_call.1} parent=1 // pred_region
      _
    $region17: #{tpu_custom_call.1} parent=1 // pred_fallthru
      _
    // Predicated region
    $region18: #{tpu_custom_call.1} parent=1 // pred_check
      _
    $region19: #{tpu_custom_call.1} parent=1 // pred_check_branch
      %20 = sbr.rel (0) target = $region21
    $region20: #{tpu_custom_call.1} parent=1 // pred_region
      _
    $region21: #{tpu_custom_call.1} parent=1 // pred_fallthru
      _
    %v21 = vld [vmem:[%s0] sm:$0xff]
    %v22 = vld [vmem:[%s1] sm:$0xff]
    %v23 = vld [vmem:[%s1 + $0x8] sm:$0xff]
    %v24 = vld [vmem:[%s1 + $0x10] sm:$0xff]
    %v25 = vld [vmem:[%s1 + $0x18] sm:$0xff]
    %v26 = vld [vmem:[%s2] sm:$0x1]
    %v28 = vperm.slane %v26, 0
    %vm30 = vcmask 261120
    %v32 = vsel %vm30, %v21, 0
    %34 = vmatpush.msra.mxu0 0.0
    %35 = vmatpush.msra.mxu0 0.0
    %36 = vmatpush.msra.mxu0 0.0
    %37 = vmatpush.msra.mxu0 0.0
    %38 = vmatpush.msra.mxu0 0.0
    %39 = vmatpush.msra.mxu0 0.0
    %40 = vmatpush.msra.mxu0 0.0
    %41 = vmatpush.msra.mxu0 0.0
    %42 = vmatpush.msra.mxu0 0.0
    %43 = vmatpush.msra.mxu0 0.0
    %44 = vmatpush.msra.mxu0 0.0
    %45 = vmatpush.msra.mxu0 0.0
    %46 = vmatpush.msra.mxu0 %v25
    %47 = vmatpush.msra.mxu0 %v24
    %48 = vmatpush.msra.mxu0 %v23
    %49 = vmatpush.msra.mxu0 %v22
    %50 = vmatmul.f32.gmra.mxu0 %v32
    %v51 = vpop.f32.mrf.mxu0
    %v52 = vadd.f32 %v28, %v51
    %53 = vdwg.mxu0
    %v54 = vmax.f32 %v52, 0.0
    %v55 = vld [vmem:[%s3] sm:$0xff]
    %v56 = vld [vmem:[%s3 + $0x8] sm:$0xff]
    %v57 = vld [vmem:[%s3 + $0x10] sm:$0xff]
    %v58 = vld [vmem:[%s3 + $0x18] sm:$0xff]
    %v59 = vld [vmem:[%s3 + $0x20] sm:$0xff]
    %v60 = vld [vmem:[%s3 + $0x28] sm:$0xff]
    %v61 = vld [vmem:[%s3 + $0x30] sm:$0xff]
    %v62 = vld [vmem:[%s3 + $0x38] sm:$0xff]
    %v63 = vld [vmem:[%s4] sm:$0x1]
    %v65 = vperm.slane %v63, 0
    %vm67 = vcmask 523264
    %v69 = vsel %vm67, %v54, 0
    %71 = vmatpush.msra.mxu0 0.0
    %72 = vmatpush.msra.mxu0 0.0
    %73 = vmatpush.msra.mxu0 0.0
    %74 = vmatpush.msra.mxu0 0.0
    %75 = vmatpush.msra.mxu0 0.0
    %76 = vmatpush.msra.mxu0 0.0
    %77 = vmatpush.msra.mxu0 0.0
    %78 = vmatpush.msra.mxu0 0.0
    %79 = vmatpush.msra.mxu0 %v62
    %80 = vmatpush.msra.mxu0 %v61
    %81 = vmatpush.msra.mxu0 %v60
    %82 = vmatpush.msra.mxu0 %v59
    %83 = vmatpush.msra.mxu0 %v58
    %84 = vmatpush.msra.mxu0 %v57
    %85 = vmatpush.msra.mxu0 %v56
    %86 = vmatpush.msra.mxu0 %v55
    %87 = vmatmul.f32.gmra.mxu0 %v69
    %v88 = vpop.f32.mrf.mxu0
    %v89 = vadd.f32 %v65, %v88
    %90 = vdwg.mxu0
    %v91 = vmax.f32 %v89, 0.0
    %vm92 = vcmask 130048
    %93 = vst.msk [vmem:[#allocation2] sm:$0xff] %vm92, %v91
    // Predicated region
    $region22: #{tpu_custom_call.1} parent=1 // pred_check
      _
    $region23: #{tpu_custom_call.1} parent=1 // pred_check_branch
      %95 = sbr.rel (0) target = $region25
    $region24: #{tpu_custom_call.1} parent=1 // pred_region
      %97 = vsyncadd [#allocation3], 0
      %s99 = sshll.u32 [#allocation2], 4
      %s100 = int_to_ptr.vmem [resolvable:$true] %s99
      %s101 = sshll.u32 %s5, 4
      %s102 = int_to_ptr.hbm [resolvable:$true] %s101
      %104 = dma.vmem_to_hbm [thread:$0]  %s100, 128, %s102, [#allocation3]
    $region25: #{tpu_custom_call.1} parent=1 // pred_fallthru
      _
    // Predicated region
    $region26: #{tpu_custom_call.1} parent=1 // pred_check
      _
    $region27: #{tpu_custom_call.1} parent=1 // pred_check_branch
      %106 = sbr.rel (0) target = $region29
    $region28: #{tpu_custom_call.1} parent=1 // pred_region
      %108 = dma.done [#allocation3], 128
    $region29: #{tpu_custom_call.1} parent=1 // pred_fallthru
      _
    %109 = vsyncpa [#allocation3], 1

</llo_original>
